<compile_context>
chip_gen: v7x
topology: tpu7x:2x2x1
jax: 0.10.0
libtpu: 0.0.40
codegen_flags: <defaults>
</compile_context>

<pallas_src>
import functools
import math

import jax
import jax.numpy as jnp
from jax.experimental import pallas as pl
from jax.experimental.pallas import tpu as pltpu


_INV_SQRT2 = 1.0 / math.sqrt(2.0)


def _vmem_limit_bytes():
    # ~80% of physical per-core VMEM (leaves headroom for compiler scratch);
    # conservative fallback if the query is unavailable.
    try:
        cap = getattr(pltpu.get_tpu_info(), "vmem_capacity_bytes", None)
        if cap:
            return int(cap * 0.8)
    except Exception:
        pass
    return 48 * 1024 * 1024


_VMEM_LIMIT = _vmem_limit_bytes()


def _cparams(dimension_semantics):
    return pltpu.CompilerParams(
        dimension_semantics=dimension_semantics,
        vmem_limit_bytes=_VMEM_LIMIT)


def _row_tile(rows, cap=512):
    # Row tile for the flattened (B*L, D) kernels.  Multiples of 16 keep bf16
    # sublane tiling happy; fall back to the full extent for tiny shapes.
    for t in (512, 256, 128, 64, 32, 16):
        if t <= cap and rows % t == 0:
            return t
    return rows


def _q_tile(seq_len):
    # Query tile for the attention kernel (>=256 keeps the MXU fed for prod L).
    for t in (256, 128, 64, 32, 16):
        if seq_len % t == 0:
            return t
    return seq_len


# ----------------------------------------------------------------------------
# In-kernel helpers (f32 statistics)
# ----------------------------------------------------------------------------
def _layernorm(x, g, b, eps):
    mu = jnp.mean(x, axis=-1, keepdims=True)
    var = jnp.mean((x - mu) ** 2, axis=-1, keepdims=True)
    return (x - mu) * jax.lax.rsqrt(var + eps) * g + b


# ----------------------------------------------------------------------------
# Kernels
# ----------------------------------------------------------------------------
def embed_ln_kernel(x_ref, tid_ref, g_ref, b_ref, o_ref, *, eps):
    # LN(token_emb + pos_emb) * (token != padding_idx); mask built from int ids.
    # eps = 1e-8 matches the module's nn.LayerNorm(input_dim, eps=1e-08).
    x = x_ref[...].astype(jnp.float32)                       # (TM, D)
    y = _layernorm(x, g_ref[...], b_ref[...], eps)
    mask = (tid_ref[...] != 0).astype(jnp.float32)           # (TM, 1)
    o_ref[...] = (y * mask).astype(o_ref.dtype)


def mha_ln_kernel(len_ref, x_ref, wqkv_hbm, wo_hbm, bqkv_ref, bo_ref,
                  g_ref, beta_ref, o_ref,
                  wqkv_v, wo_v, kv_v, sems,
                  *, num_heads, head_dim, eps):
    # Fused per (batch, query-tile): Q projection -> per-head softmax attention
    # against full-sequence K/V scratch -> output projection -> residual ->
    # LayerNorm (post-norm, norm1).
    b = pl.program_id(0)
    qi = pl.program_id(1)
    L, D = x_ref.shape
    TQ = o_ref.shape[0]

    # One-time DMA of the big weight matrices into single-buffered VMEM scratch.
    # Grid axes are "arbitrary" (sequential), so (b==0, qi==0) is the first step.
    @pl.when(jnp.logical_and(b == 0, qi == 0))
    def _():
        cw = pltpu.make_async_copy(wqkv_hbm, wqkv_v, sems.at[0])
        co = pltpu.make_async_copy(wo_hbm, wo_v, sems.at[1])
        cw.start(); co.start(); cw.wait(); co.wait()

    bqkv = bqkv_ref[...]                                     # (1, 3D) f32

    # K/V for the full sequence, computed once per batch element -> bf16 scratch.
    @pl.when(qi == 0)
    def _():
        kvf = jnp.dot(x_ref[...], wqkv_v[:, D:],
                      preferred_element_type=jnp.float32) + bqkv[:, D:]
        kv_v[...] = kvf.astype(kv_v.dtype)                   # (L, 2D)

    # Q for this query tile (1/sqrt(head_dim) folded into the Q weights).
    q_start = pl.multiple_of(qi * TQ, TQ)
    xq = x_ref[pl.ds(q_start, TQ), :]                        # (TQ, D) bf16
    q = (jnp.dot(xq, wqkv_v[:, :D], preferred_element_type=jnp.float32)
         + bqkv[:, :D]).astype(xq.dtype)                     # single bf16 cast

    # Key-padding bias from text_length (scalar prefetch, SMEM):
    # key position j is masked iff j >= text_length[b].
    tl = len_ref[b]
    col = jax.lax.broadcasted_iota(jnp.int32, (1, L), 1)
    kbias = jnp.where(col >= tl, jnp.float32(-1e30), jnp.float32(0.0))

    kv = kv_v[...]                                           # (L, 2D) bf16
    heads = []
    for h in range(num_heads):                               # static unroll
        qh = q[:, h * head_dim:(h + 1) * head_dim]
        kh = kv[:, h * head_dim:(h + 1) * head_dim]
        vh = kv[:, D + h * head_dim:D + (h + 1) * head_dim]
        s = jax.lax.dot_general(qh, kh, (((1,), (1,)), ((), ())),
                                preferred_element_type=jnp.float32) + kbias
        s = s - jnp.max(s, axis=-1, keepdims=True)
        p = jnp.exp(s)
        p = p * pl.reciprocal(jnp.sum(p, axis=-1, keepdims=True), approx=True)
        heads.append(jnp.dot(p.astype(vh.dtype), vh,
                             preferred_element_type=jnp.float32))
    attn = jnp.concatenate(heads, axis=-1)                   # (TQ, D) f32, in-register

    out = jnp.dot(attn.astype(wo_v.dtype), wo_v[...],
                  preferred_element_type=jnp.float32) + bo_ref[...]
    y = _layernorm(xq.astype(jnp.float32) + out, g_ref[...], beta_ref[...], eps)
    o_ref[...] = y.astype(o_ref.dtype)


def ffn_ln_kernel(x_ref, w1_hbm, w2_hbm, b1_ref, b2_ref, g_ref, beta_ref, o_ref,
                  w1_v, w2_v, sems, *, eps):
    # Fused: linear1 + exact-erf GELU + linear2 + residual add + LayerNorm (norm2).
    @pl.when(pl.program_id(0) == 0)
    def _():
        c1 = pltpu.make_async_copy(w1_hbm, w1_v, sems.at[0])
        c2 = pltpu.make_async_copy(w2_hbm, w2_v, sems.at[1])
        c1.start(); c2.start(); c1.wait(); c2.wait()

    x = x_ref[...].astype(jnp.float32)                       # (TM, D) residual
    h = jnp.dot(x_ref[...], w1_v[...],
                preferred_element_type=jnp.float32) + b1_ref[...]        # (TM, FF)
    h = 0.5 * h * (1.0 + jax.lax.erf(h * jnp.float32(_INV_SQRT2)))       # exact GELU
    ffn = jnp.dot(h.astype(w2_v.dtype), w2_v[...],
                  preferred_element_type=jnp.float32) + b2_ref[...]      # (TM, D)
    o_ref[...] = _layernorm(x + ffn, g_ref[...], beta_ref[...], eps).astype(o_ref.dtype)


def ln_out_kernel(x_ref, g_ref, beta_ref, w_ref, b_ref, o_ref, *, eps):
    # text_out_projection = LayerNorm -> Linear (weights padded to 128 lanes).
    y = _layernorm(x_ref[...].astype(jnp.float32), g_ref[...], beta_ref[...], eps)
    o_ref[...] = (jnp.dot(y.astype(w_ref.dtype), w_ref[...],
                          preferred_element_type=jnp.float32)
                  + b_ref[...]).astype(o_ref.dtype)


# ----------------------------------------------------------------------------
# pallas_call wrappers
# ----------------------------------------------------------------------------
def _full(arr):
    n = arr.ndim
    return pl.BlockSpec(arr.shape, lambda i: (0,) * n)


def pallas_embed_ln(x0, tid, g, b, eps):
    R, D = x0.shape
    TM = _row_tile(R)
    return pl.pallas_call(
        functools.partial(embed_ln_kernel, eps=eps),
        out_shape=jax.ShapeDtypeStruct((R, D), x0.dtype),
        grid=(R // TM,),
        in_specs=[pl.BlockSpec((TM, D), lambda i: (i, 0)),
                  pl.BlockSpec((TM, 1), lambda i: (i, 0)),
                  _full(g), _full(b)],
        out_specs=pl.BlockSpec((TM, D), lambda i: (i, 0)),
        compiler_params=_cparams(("parallel",)),
    )(x0, tid, g, b)


def pallas_mha_ln(lens, x, w_qkv, b_qkv, wo, bo, g, beta, num_heads, head_dim, eps):
    B, L, D = x.shape
    TQ = _q_tile(L)
    kern = functools.partial(mha_ln_kernel, num_heads=num_heads,
                             head_dim=head_dim, eps=eps)

    def x_map(b, qi, _lens):
        return (b, 0, 0)

    def o_map(b, qi, _lens):
        return (b, qi, 0)

    def w_map(b, qi, _lens):
        return (0, 0)

    grid_spec = pltpu.PrefetchScalarGridSpec(
        num_scalar_prefetch=1,
        grid=(B, L // TQ),
        in_specs=[pl.BlockSpec((None, L, D), x_map),        # full sequence per b
                  pl.BlockSpec(memory_space=pl.ANY),        # w_qkv (D, 3D) in HBM
                  pl.BlockSpec(memory_space=pl.ANY),        # wo    (D, D)  in HBM
                  pl.BlockSpec(b_qkv.shape, w_map),
                  pl.BlockSpec(bo.shape, w_map),
                  pl.BlockSpec(g.shape, w_map),
                  pl.BlockSpec(beta.shape, w_map)],
        out_specs=pl.BlockSpec((None, TQ, D), o_map),
        scratch_shapes=[pltpu.VMEM(w_qkv.shape, w_qkv.dtype),   # single-buffered
                        pltpu.VMEM(wo.shape, wo.dtype),
                        pltpu.VMEM((L, 2 * D), x.dtype),        # bf16 K|V
                        pltpu.SemaphoreType.DMA((2,))])

    return pl.pallas_call(
        kern,
        out_shape=jax.ShapeDtypeStruct((B, L, D), x.dtype),
        grid_spec=grid_spec,
        # "arbitrary" so the copy-once weight DMA at the global first step is
        # valid (see TODO about per-core replication for v7x megacore).
        compiler_params=_cparams(("arbitrary", "arbitrary")),
    )(lens, x, w_qkv, wo, b_qkv, bo, g, beta)


def pallas_ffn_ln(x, w1, b1, w2, b2, g, beta, eps):
    R, D = x.shape
    TM = _row_tile(R, cap=256)   # cap keeps the TM x FF f32 GELU tile v7x-safe
    return pl.pallas_call(
        functools.partial(ffn_ln_kernel, eps=eps),
        out_shape=jax.ShapeDtypeStruct((R, D), x.dtype),
        grid=(R // TM,),
        in_specs=[pl.BlockSpec((TM, D), lambda i: (i, 0)),
                  pl.BlockSpec(memory_space=pl.ANY),        # w1 (D, FF) in HBM
                  pl.BlockSpec(memory_space=pl.ANY),        # w2 (FF, D) in HBM
                  _full(b1), _full(b2), _full(g), _full(beta)],
        out_specs=pl.BlockSpec((TM, D), lambda i: (i, 0)),
        scratch_shapes=[pltpu.VMEM(w1.shape, w1.dtype),         # single-buffered
                        pltpu.VMEM(w2.shape, w2.dtype),
                        pltpu.SemaphoreType.DMA((2,))],
        compiler_params=_cparams(("arbitrary",)),
    )(x, w1, w2, b1, b2, g, beta)


def pallas_ln_out(x, g, beta, w, b, eps):
    R, D = x.shape
    OUT_P = w.shape[1]
    TM = _row_tile(R)
    return pl.pallas_call(
        functools.partial(ln_out_kernel, eps=eps),
        out_shape=jax.ShapeDtypeStruct((R, OUT_P), x.dtype),    # bf16 writeback
        grid=(R // TM,),
        in_specs=[pl.BlockSpec((TM, D), lambda i: (i, 0)),
                  _full(g), _full(beta), _full(w), _full(b)],
        out_specs=pl.BlockSpec((TM, OUT_P), lambda i: (i, 0)),
        compiler_params=_cparams(("parallel",)),
    )(x, g, beta, w, b)


# ----------------------------------------------------------------------------
# Parameter construction (mirrors the PyTorch module's shapes)
# ----------------------------------------------------------------------------
def init_params(key, D, H, FF, OUT, num_layers, vocab, ctx, dtype=jnp.bfloat16):
    assert D % H == 0
    Dh = D // H
    scale_q = 1.0 / math.sqrt(Dh)
    OUT_P = max(128, ((OUT + 127) // 128) * 128)     # lane-dense padded out dim

    keys = iter(jax.random.split(key, 4 + 6 * num_layers))

    def nrm(shape, std=0.02):
        return jax.random.normal(next(keys), shape, jnp.float32) * std

    params = {"out_dim": OUT, "out_dim_padded": OUT_P}
    tok = nrm((vocab, D)).at[0].set(0.0)             # padding_idx = 0
    params["token_embedding"] = tok.astype(dtype)
    params["position_embedding"] = nrm((ctx, D)).astype(dtype)
    params["ln0_g"] = jnp.ones((1, D), jnp.float32)
    params["ln0_b"] = jnp.zeros((1, D), jnp.float32)

    layers = []
    for _ in range(num_layers):
        in_proj_w = nrm((3 * D, D))                  # PyTorch layout (3D, D)
        in_proj_b = jnp.zeros((3 * D,), jnp.float32)
        w_qkv = in_proj_w.T                          # (D, 3D): x @ W^T convention
        b_qkv = in_proj_b.reshape(1, 3 * D)
        # fold 1/sqrt(head_dim) into the Q projection
        w_qkv = w_qkv.at[:, :D].multiply(scale_q)
        b_qkv = b_qkv.at[:, :D].multiply(scale_q)

        out_proj_w = nrm((D, D))
        out_proj_b = jnp.zeros((D,), jnp.float32)
        w1 = nrm((FF, D)); b1 = nrm((FF,))           # linear1
        w2 = nrm((D, FF)); b2 = nrm((D,))            # linear2

        layers.append(dict(
            w_qkv=w_qkv.astype(dtype), b_qkv=b_qkv,
            wo=out_proj_w.T.astype(dtype), bo=out_proj_b.reshape(1, D),
            n1_g=jnp.ones((1, D), jnp.float32), n1_b=jnp.zeros((1, D), jnp.float32),
            n2_g=jnp.ones((1, D), jnp.float32), n2_b=jnp.zeros((1, D), jnp.float32),
            w1=w1.T.astype(dtype), b1=b1.reshape(1, FF),
            w2=w2.T.astype(dtype), b2=b2.reshape(1, D),
        ))
    params["layers"] = layers

    params["lnf_g"] = jnp.ones((1, D), jnp.float32)
    params["lnf_b"] = jnp.zeros((1, D), jnp.float32)
    w_out = nrm((OUT, D)).T                          # (D, OUT)
    b_out = nrm((OUT,))
    params["w_out"] = (jnp.zeros((D, OUT_P), jnp.float32)
                       .at[:, :OUT].set(w_out).astype(dtype))
    params["b_out"] = jnp.zeros((1, OUT_P), jnp.float32).at[:, :OUT].set(b_out)
    return params


# ----------------------------------------------------------------------------
# Forward pass
# ----------------------------------------------------------------------------
def transformer_text_encoder(params, text, text_length, num_heads):
    B, L = text.shape
    D = params["token_embedding"].shape[1]
    Dh = D // num_heads
    OUT = params["out_dim"]

    # Embedding lookups + add (glue, plain JAX gather).
    # TODO(synk): move the token gather into the embed kernel via scalar-prefetched
    # ids + manual row DMA to avoid materialising the (B,L,D) tok tensor in HBM.
    tok = jnp.take(params["token_embedding"], text, axis=0)          # (B, L, D)
    pos = params["position_embedding"][:L]                           # (L, D)
    x0 = (tok + pos[None, :, :]).reshape(B * L, D)
    tid = text.reshape(B * L, 1).astype(jnp.int32)

    # LN(tok+pos) * token_mask; token mask built in-kernel from the token ids.
    x = pallas_embed_ln(x0, tid, params["ln0_g"], params["ln0_b"], eps=1e-8)
    x = x.reshape(B, L, D)                     # self.dropout: eval -> identity

    lens = text_length.astype(jnp.int32)       # key-padding mask source (SMEM)
    for lyr in params["layers"]:
        x = pallas_mha_ln(lens, x, lyr["w_qkv"], lyr["b_qkv"], lyr["wo"], lyr["bo"],
                          lyr["n1_g"], lyr["n1_b"], num_heads, Dh, eps=1e-5)
        xf = pallas_ffn_ln(x.reshape(B * L, D), lyr["w1"], lyr["b1"],
                           lyr["w2"], lyr["b2"], lyr["n2_g"], lyr["n2_b"], eps=1e-5)
        x = xf.reshape(B, L, D)

    out_p = pallas_ln_out(x.reshape(B * L, D), params["lnf_g"], params["lnf_b"],
                          params["w_out"], params["b_out"], eps=1e-5)
    return out_p[:, :OUT].reshape(B, L, OUT)   # drop lane padding (bf16 output)


# ----------------------------------------------------------------------------
if __name__ == "__main__":
    B, L = 2, 8
    D, H, OUT = 32, 4, 16
    NUM_LAYERS = 2
    VOCAB, CTX = 50, 50
    FF = 4 * D
    # NOTE: production sizes should use D, FF multiples of 128 and L a multiple
    # of 16 (bf16) to avoid lane/sublane padding; toy sizes are correct but padded.

    key = jax.random.PRNGKey(0)
    pkey, tkey = jax.random.split(key)
    params = init_params(pkey, D, H, FF, OUT, NUM_LAYERS, VOCAB, CTX)

    text_length = jnp.array([6, 4], dtype=jnp.int32)
    tok_ids = jax.random.randint(tkey, (B, L), 1, VOCAB, dtype=jnp.int32)
    pos_idx = jnp.arange(L, dtype=jnp.int32)[None, :]
    text = jnp.where(pos_idx < text_length[:, None], tok_ids, 0).astype(jnp.int32)

    out = transformer_text_encoder(params, text, text_length, H)
    out = jax.block_until_ready(out)
    assert out.shape == (B, L, OUT), out.shape
    assert bool(jnp.all(jnp.isfinite(out.astype(jnp.float32))))
    print("KERNEL_OK")
</pallas_src>

<mosaic_0001>
module attributes {stable_mosaic.version = 11 : i64} {
  func.func @embed_ln_kernel(%arg0: i32, %arg1: memref<16x32xbf16, #tpu.memory_space<vmem>>, %arg2: memref<16x1xi32, #tpu.memory_space<vmem>>, %arg3: memref<1x32xf32, #tpu.memory_space<vmem>>, %arg4: memref<1x32xf32, #tpu.memory_space<vmem>>, %arg5: memref<16x32xbf16, #tpu.memory_space<vmem>>) attributes {dimension_semantics = [#tpu.dimension_semantics<parallel>], iteration_bounds = array<i64: 1>, scalar_prefetch = 0 : i64, scratch_operands = 0 : i64, tpu.core_type = #tpu.core_type<tc>, window_params = [{transform_indices = @transform_0, window_bounds = array<i64: 16, 32>}, {transform_indices = @transform_1, window_bounds = array<i64: 16, 1>}, {pipeline_mode = #tpu.pipeline_mode<synchronous>, transform_indices = @transform_2, window_bounds = array<i64: 1, 32>}, {pipeline_mode = #tpu.pipeline_mode<synchronous>, transform_indices = @transform_3, window_bounds = array<i64: 1, 32>}, {transform_indices = @transform_4, window_bounds = array<i64: 16, 32>}]} {
    %c0 = arith.constant 0 : index
    %c0_0 = arith.constant 0 : index
    %0 = vector.load %arg1[%c0, %c0_0] : memref<16x32xbf16, #tpu.memory_space<vmem>>, vector<16x32xbf16>
    %1 = arith.extf %0 : vector<16x32xbf16> to vector<16x32xf32>
    %c0_1 = arith.constant 0 : index
    %c0_2 = arith.constant 0 : index
    %2 = vector.load %arg3[%c0_1, %c0_2] : memref<1x32xf32, #tpu.memory_space<vmem>>, vector<1x32xf32>
    %c0_3 = arith.constant 0 : index
    %c0_4 = arith.constant 0 : index
    %3 = vector.load %arg4[%c0_3, %c0_4] : memref<1x32xf32, #tpu.memory_space<vmem>>, vector<1x32xf32>
    %cst = arith.constant dense<0.000000e+00> : vector<16xf32>
    %4 = vector.multi_reduction <add>, %1, %cst [1] : vector<16x32xf32> to vector<16xf32>
    %5 = vector.shape_cast %4 : vector<16xf32> to vector<16x1xf32>
    %cst_5 = arith.constant 3.200000e+01 : f32
    %6 = vector.broadcast %cst_5 : f32 to vector<16x1xf32>
    %7 = arith.divf %5, %6 : vector<16x1xf32>
    %8 = vector.broadcast %7 : vector<16x1xf32> to vector<16x32xf32>
    %9 = arith.subf %1, %8 : vector<16x32xf32>
    %10 = arith.mulf %9, %9 : vector<16x32xf32>
    %cst_6 = arith.constant dense<0.000000e+00> : vector<16xf32>
    %11 = vector.multi_reduction <add>, %10, %cst_6 [1] : vector<16x32xf32> to vector<16xf32>
    %12 = vector.shape_cast %11 : vector<16xf32> to vector<16x1xf32>
    %cst_7 = arith.constant 3.200000e+01 : f32
    %13 = vector.broadcast %cst_7 : f32 to vector<16x1xf32>
    %14 = arith.divf %12, %13 : vector<16x1xf32>
    %15 = vector.broadcast %7 : vector<16x1xf32> to vector<16x32xf32>
    %16 = arith.subf %1, %15 : vector<16x32xf32>
    %cst_8 = arith.constant 9.99999993E-9 : f32
    %17 = vector.broadcast %cst_8 : f32 to vector<16x1xf32>
    %18 = arith.addf %14, %17 : vector<16x1xf32>
    %19 = math.rsqrt %18 : vector<16x1xf32>
    %20 = vector.broadcast %19 : vector<16x1xf32> to vector<16x32xf32>
    %21 = arith.mulf %16, %20 : vector<16x32xf32>
    %22 = vector.broadcast %2 : vector<1x32xf32> to vector<16x32xf32>
    %23 = arith.mulf %21, %22 : vector<16x32xf32>
    %24 = vector.broadcast %3 : vector<1x32xf32> to vector<16x32xf32>
    %25 = arith.addf %23, %24 : vector<16x32xf32>
    %c0_9 = arith.constant 0 : index
    %c0_10 = arith.constant 0 : index
    %26 = vector.load %arg2[%c0_9, %c0_10] : memref<16x1xi32, #tpu.memory_space<vmem>>, vector<16x1xi32>
    %c0_i32 = arith.constant 0 : i32
    %27 = vector.broadcast %c0_i32 : i32 to vector<16x1xi32>
    %28 = arith.cmpi ne, %26, %27 : vector<16x1xi32>
    %29 = arith.extui %28 : vector<16x1xi1> to vector<16x1xi32>
    %30 = arith.sitofp %29 : vector<16x1xi32> to vector<16x1xf32>
    %31 = vector.broadcast %30 : vector<16x1xf32> to vector<16x32xf32>
    %32 = arith.mulf %25, %31 : vector<16x32xf32>
    %33 = arith.truncf %32 : vector<16x32xf32> to vector<16x32xbf16>
    %c0_11 = arith.constant 0 : index
    %c0_12 = arith.constant 0 : index
    %34 = vector.load %arg5[%c0_11, %c0_12] : memref<16x32xbf16, #tpu.memory_space<vmem>>, vector<16x32xbf16>
    tpu.vector_store %arg5[%c0_11, %c0_12], %33 {strides = array<i32>} : memref<16x32xbf16, #tpu.memory_space<vmem>>, vector<16x32xbf16>,
    return
  }
  func.func @transform_0(%arg0: i32) -> (i32, i32) {
    %c0_i32 = arith.constant 0 : i32
    %c0_i32_0 = arith.constant 0 : i32
    return %arg0, %c0_i32 : i32, i32
  }
  func.func @transform_1(%arg0: i32) -> (i32, i32) {
    %c0_i32 = arith.constant 0 : i32
    %c0_i32_0 = arith.constant 0 : i32
    return %arg0, %c0_i32 : i32, i32
  }
  func.func @transform_2(%arg0: i32) -> (i32, i32) {
    %c0_i32 = arith.constant 0 : i32
    %c0_i32_0 = arith.constant 0 : i32
    %c0_i32_1 = arith.constant 0 : i32
    return %c0_i32, %c0_i32_0 : i32, i32
  }
  func.func @transform_3(%arg0: i32) -> (i32, i32) {
    %c0_i32 = arith.constant 0 : i32
    %c0_i32_0 = arith.constant 0 : i32
    %c0_i32_1 = arith.constant 0 : i32
    return %c0_i32, %c0_i32_0 : i32, i32
  }
  func.func @transform_4(%arg0: i32) -> (i32, i32) {
    %c0_i32 = arith.constant 0 : i32
    %c0_i32_0 = arith.constant 0 : i32
    return %arg0, %c0_i32 : i32, i32
  }
}

</mosaic_0001>

<llo_original>
// kernel: tpu_custom_call.1
$region0: #{tpu_custom_call.1}
  #allocation0 [shape = 'u32[]', space=smem, size = 0x4, offset = 0x4, fixed_abs, tag = 'smem constant byte address 0x4 - core index']
  #allocation1 [shape = 'u32[144,128]{1,0:T(1,128)}', space=vmem, size = 0x12000, scoped, tag = 'internal scratch']
  %s0 = inlined_call_operand.vmem [shape: bf16[16,32], index: 0, kind: input, shape index: {}]
  %s1 = inlined_call_operand.vmem [shape: s32[16,1], index: 1, kind: input, shape index: {}]
  %s2 = inlined_call_operand.vmem [shape: f32[1,32], index: 2, kind: input, shape index: {}]
  %s3 = inlined_call_operand.vmem [shape: f32[1,32], index: 3, kind: input, shape index: {}]
  %s4 = inlined_call_operand.hbm [shape: bf16[16,32], index: 4, kind: output, shape index: {}]
  %s5 = sld [smem:[#allocation0]]
  $region26: #{tpu_custom_call.1} parent=0
    _
  %s7 = ssub.s32 1, %s5
  %s8 = scalar_select 0, %s7, %s5
  $region1: #{tpu_custom_call.1} parent=0
    #allocation2 [shape = 'u8[4096]{0}', space=vmem, size = 0x1000, scoped, tag = 'output window, operand 0, single buffered']
    #allocation3 [shape = 's32[1]{0}', space=sflag, size = 0x4, scoped, tag = 'scoped memory for tpu_custom_call.1']
    %9 = vsyncpa [#allocation3], 0
    // Predicated region
    $region2: #{tpu_custom_call.1} parent=1 // pred_check
      _
    $region3: #{tpu_custom_call.1} parent=1 // pred_check_branch
      %11 = sbr.rel (0) target = $region5
    $region4: #{tpu_custom_call.1} parent=1 // pred_region
      _
    $region5: #{tpu_custom_call.1} parent=1 // pred_fallthru
      _
    // Predicated region
    $region6: #{tpu_custom_call.1} parent=1 // pred_check
      _
    $region7: #{tpu_custom_call.1} parent=1 // pred_check_branch
      %13 = sbr.rel (0) target = $region9
    $region8: #{tpu_custom_call.1} parent=1 // pred_region
      _
    $region9: #{tpu_custom_call.1} parent=1 // pred_fallthru
      _
    // Predicated region
    $region10: #{tpu_custom_call.1} parent=1 // pred_check
      _
    $region11: #{tpu_custom_call.1} parent=1 // pred_check_branch
      %15 = sbr.rel (0) target = $region13
    $region12: #{tpu_custom_call.1} parent=1 // pred_region
      _
    $region13: #{tpu_custom_call.1} parent=1 // pred_fallthru
      _
    // Predicated region
    $region14: #{tpu_custom_call.1} parent=1 // pred_check
      _
    $region15: #{tpu_custom_call.1} parent=1 // pred_check_branch
      %17 = sbr.rel (0) target = $region17
    $region16: #{tpu_custom_call.1} parent=1 // pred_region
      _
    $region17: #{tpu_custom_call.1} parent=1 // pred_fallthru
      _
    %v18 = vld [vmem:[%s0] sm:$0xf]
    %v19 = vld [vmem:[%s0 + $0x4] sm:$0xf]
    %v20 = vunpack.c.l.bf16 %v18
    %v21 = vunpack.c.l.bf16 %v19
    %v22 = vld [vmem:[%s2] sm:$0x1]
    %v23 = vld [vmem:[%s3] sm:$0x1]
    %vm24 = vcmask 261120
    %v25 = vsel %vm24, %v20, 0.0
    %26 = vadd.xlane.f32.xlu0 %v25
    %v27 = vpop.xlane.xlu0 %26
    %v28 = vsel %vm24, %v21, 0.0
    %29 = vadd.xlane.f32.xlu0 %v28
    %v30 = vpop.xlane.xlu0 %29
    %v31 = vrcp.pop 32.0
    %v32 = vmul.f32 %v27, %v31
    %v33 = vmul.f32 %v30, %v31
    %v34 = vsub.f32 %v20, %v32
    %v35 = vsub.f32 %v21, %v33
    %v36 = vmul.f32 %v34, %v34
    %v37 = vmul.f32 %v35, %v35
    %v38 = vsel %vm24, %v36, 0.0
    %39 = vadd.xlane.f32.xlu0 %v38
    %v40 = vpop.xlane.xlu0 %39
    %v41 = vsel %vm24, %v37, 0.0
    %42 = vadd.xlane.f32.xlu0 %v41
    %v43 = vpop.xlane.xlu0 %42
    %v44 = vmul.f32 %v40, %v31
    %v45 = vmul.f32 %v43, %v31
    %v46 = vadd.f32 %v44, 1e-08
    %v47 = vadd.f32 %v45, 1e-08
    %v48 = vrsqrt.pop %v46
    %v49 = vrsqrt.pop %v47
    %v50 = vmul.f32 %v34, %v48
    %v51 = vmul.f32 %v35, %v49
    %v53 = vlaneseq
    %v54 = vshrl.u32 %v53, 7
    %v55 = vsub.s32 0, %v54
    %v56 = vrot.slane %v22, %v55
    %v58 = vmul.f32 %v50, %v56
    %v59 = vmul.f32 %v51, %v56
    %v61 = vlaneseq
    %v62 = vshrl.u32 %v61, 7
    %v63 = vsub.s32 0, %v62
    %v64 = vrot.slane %v23, %v63
    %v66 = vadd.f32 %v58, %v64
    %v67 = vadd.f32 %v59, %v64
    %v68 = vld [vmem:[%s1] sm:$0xff]
    %v69 = vld [vmem:[%s1 + $0x8] sm:$0xff]
    %vm70 = vcmp.ne.s32.totalorder %v68, 0
    %vm71 = vcmp.ne.s32.totalorder %v69, 0
    %v72 = vsel %vm70, 1, 0
    %v73 = vsel %vm71, 1, 0
    %v74 = vcvt.s32.f32 %v72
    %v75 = vcvt.s32.f32 %v73
    %77 = vset.pattern.permute.xlu0 0
    %78 = vperm.xlu0 %77, %v74
    %v79 = vpop.permute.xlu0 %78
    %82 = vset.pattern.permute.xlu0 0
    %83 = vperm.xlu0 %82, %v75
    %v84 = vpop.permute.xlu0 %83
    %v86 = vmul.f32 %v66, %v79
    %v87 = vmul.f32 %v67, %v84
    %v88 = vpack.c.bf16 %v87, %v86
    %v90 = vunpack.c.l.b16 %v88
    %v91 = vunpack.c.h.b16 %v88
    %v92 = vpack.c.b16 %v90, %v90
    %v93 = vpack.c.b16 %v91, %v91
    %vm96 = vcmask 257024
    %97 = vst.msk [vmem:[#allocation2] sm:$0xf] %vm96, %v92
    %98 = vst.msk [vmem:[#allocation2 + $0x4] sm:$0xf] %vm96, %v93
    // Predicated region
    $region18: #{tpu_custom_call.1} parent=1 // pred_check
      _
    $region19: #{tpu_custom_call.1} parent=1 // pred_check_branch
      %100 = sbr.rel (0) target = $region21
    $region20: #{tpu_custom_call.1} parent=1 // pred_region
      %s102 = ssub.s32 128, 128
      %103 = vsyncadd [#allocation3], %s102
      %s104 = sshll.u32 [#allocation2], 4
      %s105 = int_to_ptr.vmem [resolvable:$true] %s104
      %110 = dma.vmem_to_hbm [thread:$0]  %s105, 128, %s4, [#allocation3], 64, 64, 4
    $region21: #{tpu_custom_call.1} parent=1 // pred_fallthru
      _
    // Predicated region
    $region22: #{tpu_custom_call.1} parent=1 // pred_check
      _
    $region23: #{tpu_custom_call.1} parent=1 // pred_check_branch
      %112 = sbr.rel (0) target = $region25
    $region24: #{tpu_custom_call.1} parent=1 // pred_region
      %113 = dma.done [#allocation3], 128
    $region25: #{tpu_custom_call.1} parent=1 // pred_fallthru
      _
    %114 = vsyncpa [#allocation3], 1

</llo_original>
